<compile_context>
chip_gen: v7x
topology: tpu7x:2x2x1
jax: 0.10.0
libtpu: 0.0.40
codegen_flags: <defaults>
</compile_context>

<pallas_src>
import jax
import jax.numpy as jnp
from jax import lax
from jax.experimental import pallas as pl
from jax.experimental.pallas import tpu as pltpu

EPS = 1e-5


# ---------------------------------------------------------------------------
# Hardware-aware sizing helpers
# ---------------------------------------------------------------------------
def _vmem_limit_bytes():
    """Generation-aware scoped-VMEM limit (headroom under physical capacity)."""
    phys = 64 * 1024 * 1024                      # conservative: v7x per-TC VMEM
    try:
        cap = getattr(pltpu.get_tpu_info(), "vmem_capacity_bytes", None)
        if cap:
            phys = int(cap)
    except Exception:
        pass
    # ~45 MiB on v7x (64 MiB physical); capped at 100 MiB on v5e/v6e (128 MiB).
    return int(min(phys * 0.7, 100 * 1024 * 1024))


def _choose_b_tile(B, S, D, M, in_item, out_item, comp_item, budget_bytes):
    """Largest batch tile whose per-step footprint (double-buffered inputs and
    output plus in-kernel temporaries) fits the given VMEM budget."""
    per_b = S * D * (2 * M * in_item + 2 * M * out_item + 3 * comp_item)
    return int(max(1, min(B, budget_bytes // max(per_b, 1))))


# ---------------------------------------------------------------------------
# Kernels
# ---------------------------------------------------------------------------
def _make_stats_kernel(num_m, bt, nbpc, B, needs_mask):
    """Accumulate per-channel sum and sum(x*x) for every modality.

    Grid is (n_split, nbpc): axis 0 is megacore-"parallel" (each core owns its
    own (1, 2M, D) partial-stats slab); axis 1 walks this core's batch tiles.
    """

    def kernel(*refs):
        x_refs = refs[:num_m]
        stats_ref = refs[num_m]                    # (1, 2M, D) f32, resident

        @pl.when(pl.program_id(1) == 0)
        def _init():
            stats_ref[...] = jnp.zeros_like(stats_ref)

        t = pl.program_id(0) * nbpc + pl.program_id(1)   # global batch-tile id
        sums, sqs = [], []
        for m in range(num_m):
            x = x_refs[m][...].astype(jnp.float32)       # (bt, S, D)
            if needs_mask:
                row = lax.broadcasted_iota(jnp.int32, (bt, S, D), 0)
                x = jnp.where(t * bt + row < B, x, 0.0)
            sums.append(jnp.sum(jnp.sum(x, axis=0), axis=0, keepdims=True))
            sqs.append(jnp.sum(jnp.sum(x * x, axis=0), axis=0, keepdims=True))
        upd = jnp.concatenate(sums + sqs, axis=0)        # (2M, D)
        stats_ref[...] += upd[None, :, :]                # single full-tile RMW

    return kernel


def _make_norm_kernel(num_m, compute_dtype):
    """Pure y = x*a + c stream; a/c are the pre-folded BN affine terms."""

    def kernel(*refs):
        x_refs = refs[:num_m]
        a_ref, c_ref, out_ref = refs[num_m], refs[num_m + 1], refs[num_m + 2]
        for m in range(num_m):
            a = a_ref[m:m + 1, :].astype(compute_dtype)      # (1, D)
            c = c_ref[m:m + 1, :].astype(compute_dtype)      # (1, D)
            x = x_refs[m][...].astype(compute_dtype)         # (bt, S, D)
            y = x * a + c
            out_ref[:, m:m + 1, :, :] = y[:, None, :, :].astype(out_ref.dtype)

    return kernel


def _make_fused_kernel(num_m, inv_n):
    """Single-pass BN + concat when everything fits VMEM (read once, write once)."""

    def kernel(*refs):
        x_refs = refs[:num_m]
        gamma_ref, beta_ref, out_ref = refs[num_m], refs[num_m + 1], refs[num_m + 2]
        for m in range(num_m):
            x = x_refs[m][...].astype(jnp.float32)                      # (B, S, D)
            s = jnp.sum(jnp.sum(x, axis=0), axis=0, keepdims=True)      # (1, D)
            sq = jnp.sum(jnp.sum(x * x, axis=0), axis=0, keepdims=True) # (1, D)
            mean = s * inv_n
            var = jnp.maximum(sq * inv_n - mean * mean, 0.0)            # biased, clamped
            a = gamma_ref[m:m + 1, :] * lax.rsqrt(var + EPS)
            c = beta_ref[m:m + 1, :] - mean * a
            y = x * a + c
            out_ref[:, m:m + 1, :, :] = y[:, None, :, :].astype(out_ref.dtype)

    return kernel


# ---------------------------------------------------------------------------
# Wrapper (forward pass of the module, temporal_concat + BatchNorm1d)
# ---------------------------------------------------------------------------
def joint_representation_learner(encoder_outputs, encoder_hiddens, gammas, betas,
                                 *, force_two_pass=False, b_tile_override=None):
    """encoder_outputs: list of M arrays (B, S, D) (equal shapes).
    encoder_hiddens:   list of K arrays (B, H).
    gammas/betas:      lists of M arrays (D,) -- BatchNorm1d affine params.
    Returns (B, M*S, D) temporally-concatenated normalized features and the
    mean (B, H) hidden state."""
    if not isinstance(encoder_outputs, (list, tuple)):
        encoder_outputs = [encoder_outputs]
    if not isinstance(encoder_hiddens, (list, tuple)):
        encoder_hiddens = [encoder_hiddens]

    num_m = len(encoder_outputs)
    B, S, D = encoder_outputs[0].shape
    for x in encoder_outputs:
        assert x.shape == (B, S, D), "all modalities must share (B, S, D)"

    dtype = encoder_outputs[0].dtype
    in_item = jnp.dtype(dtype).itemsize
    out_item = in_item
    # bf16/fp16 inputs: run the x*a + c stream in the input dtype (native VPU on
    # v6e/v7x); stats + affine folding always stay in f32.
    # TODO(synk): keep an f32 compute path on v5e (no bf16 VALU) if profiled.
    compute_dtype = jnp.float32 if in_item >= 4 else dtype
    comp_item = jnp.dtype(compute_dtype).itemsize

    gamma = jnp.stack([jnp.asarray(g, jnp.float32) for g in gammas], axis=0)  # (M, D)
    beta = jnp.stack([jnp.asarray(b, jnp.float32) for b in betas], axis=0)    # (M, D)

    vmem_limit = _vmem_limit_bytes()
    tile_budget = int(vmem_limit * 0.75)
    inv_n = 1.0 / float(B * S)

    # ---- fused single-pass path: everything fits VMEM -----------------------
    fused_bytes = (num_m * B * S * D * (in_item + out_item + 2 * 4)
                   + 4 * num_m * D * 4)
    if not force_two_pass and fused_bytes <= int(vmem_limit * 0.45):
        out4 = pl.pallas_call(
            _make_fused_kernel(num_m, inv_n),
            out_shape=jax.ShapeDtypeStruct((B, num_m, S, D), dtype),
            grid_spec=pltpu.PrefetchScalarGridSpec(
                num_scalar_prefetch=0,
                grid=(1,),
                in_specs=[pl.BlockSpec((B, S, D), lambda i: (0, 0, 0))
                          for _ in range(num_m)]
                         + [pl.BlockSpec((num_m, D), lambda i: (0, 0)),
                            pl.BlockSpec((num_m, D), lambda i: (0, 0))],
                out_specs=pl.BlockSpec((B, num_m, S, D), lambda i: (0, 0, 0, 0)),
            ),
            compiler_params=pltpu.CompilerParams(
                dimension_semantics=("arbitrary",),
                vmem_limit_bytes=vmem_limit),
        )(*encoder_outputs, gamma, beta)
    else:
        # ---- two-sweep path ---------------------------------------------------
        bt = int(b_tile_override) if b_tile_override else _choose_b_tile(
            B, S, D, num_m, in_item, out_item, comp_item, tile_budget)
        bt = max(1, min(bt, B))
        nb = (B + bt - 1) // bt                      # cdiv grid (masked tail)
        n_split = 2 if nb >= 2 else 1                # megacore shard of sweep 1
        nbpc = (nb + n_split - 1) // n_split
        needs_mask = (B % bt != 0) or (n_split * nbpc != nb)
        last_tile = nb - 1

        # Deeper input buffering only when tiles are tiny and the grid is long.
        n_buf = 3 if (nb >= 8 and bt * S * D * in_item <= (1 << 20)) else 2

        def x_spec(index_map):
            if n_buf == 2:
                return pl.BlockSpec((bt, S, D), index_map)
            return pl.BlockSpec((bt, S, D), index_map,
                                pipeline_mode=pl.Buffered(n_buf))

        # ---- sweep 1: per-channel sum / sum-of-squares (megacore parallel) ----
        def stats_x_map(cc, bb):
            return (jnp.minimum(cc * nbpc + bb, last_tile), 0, 0)

        stats_partial = pl.pallas_call(
            _make_stats_kernel(num_m, bt, nbpc, B, needs_mask),
            out_shape=jax.ShapeDtypeStruct((n_split, 2 * num_m, D), jnp.float32),
            grid_spec=pltpu.PrefetchScalarGridSpec(
                num_scalar_prefetch=0,
                grid=(n_split, nbpc),
                in_specs=[x_spec(stats_x_map) for _ in range(num_m)],
                out_specs=pl.BlockSpec((1, 2 * num_m, D),
                                       lambda cc, bb: (cc, 0, 0)),
            ),
            compiler_params=pltpu.CompilerParams(
                dimension_semantics=("parallel", "arbitrary"),
                vmem_limit_bytes=vmem_limit),
        )(*encoder_outputs)

        # Reduce per-core partials and fold the affine once (tiny (M, D) op).
        stats = stats_partial.sum(axis=0)                         # (2M, D)
        mean = stats[:num_m] * inv_n
        var = jnp.maximum(stats[num_m:] * inv_n - mean * mean, 0.0)
        a_fold = gamma * lax.rsqrt(var + EPS)                     # (M, D) f32
        c_fold = beta - mean * a_fold                             # (M, D) f32
        # TODO(synk): very large B*S with large per-channel means may prefer a
        # shifted / Welford-style accumulation instead of E[x^2]-E[x]^2.

        # ---- sweep 2: pure y = x*a + c stream, concat written exactly once ----
        out4 = pl.pallas_call(
            _make_norm_kernel(num_m, compute_dtype),
            out_shape=jax.ShapeDtypeStruct((B, num_m, S, D), dtype),
            grid_spec=pltpu.PrefetchScalarGridSpec(
                num_scalar_prefetch=0,
                grid=(nb,),
                in_specs=[x_spec(lambda b: (b, 0, 0)) for _ in range(num_m)]
                         + [pl.BlockSpec((num_m, D), lambda b: (0, 0)),
                            pl.BlockSpec((num_m, D), lambda b: (0, 0))],
                out_specs=pl.BlockSpec((bt, num_m, S, D),
                                       lambda b: (b, 0, 0, 0)),
            ),
            compiler_params=pltpu.CompilerParams(
                dimension_semantics=("parallel",),
                vmem_limit_bytes=vmem_limit),
        )(*encoder_outputs, a_fold, c_fold)

    # Free row-major view: (B, M, S, D) -> (B, M*S, D) == torch.cat(dim=1).
    outputs = out4.reshape(B, num_m * S, D)

    # Hidden-state mean: trivial elementwise op, left to XLA (no stack copy).
    hid = encoder_hiddens[0]
    for h in encoder_hiddens[1:]:
        hid = hid + h
    hiddens = hid / jnp.asarray(len(encoder_hiddens), dtype=hid.dtype)
    return outputs, hiddens


# ---------------------------------------------------------------------------
# Pure-JAX reference (mirrors the PyTorch module forward)
# ---------------------------------------------------------------------------
def _reference(encoder_outputs, encoder_hiddens, gammas, betas):
    outs = []
    for xm, g, b in zip(encoder_outputs, gammas, betas):
        B, S, D = xm.shape
        xf = xm.reshape(B * S, D).astype(jnp.float32)
        mean = xf.mean(axis=0)
        var = ((xf - mean) ** 2).mean(axis=0)
        y = (xf - mean) / jnp.sqrt(var + EPS) * g + b
        outs.append(y.reshape(B, S, D).astype(xm.dtype))
    out = jnp.concatenate(outs, axis=1)                # temporal_concat (dim=1)
    hid = jnp.stack(encoder_hiddens, axis=0).mean(axis=0)
    return out, hid


if __name__ == "__main__":
    # M=2 modalities of (B, S, D), K=2 encoder hidden states of (B, H).
    M, K = 2, 2
    S, D, H = 8, 128, 64
    root_key = jax.random.PRNGKey(0)

    def make_inputs(B, salt):
        key = jax.random.fold_in(root_key, salt)
        keys = jax.random.split(key, M + K)
        outs = [jax.random.normal(keys[i], (B, S, D), dtype=jnp.float32)
                for i in range(M)]
        hids = [jax.random.normal(keys[M + i], (B, H), dtype=jnp.float32)
                for i in range(K)]
        gms = [1.0 + 0.05 * (i + 1) * jnp.arange(D, dtype=jnp.float32) / D
               for i in range(M)]
        bts = [0.01 * (i + 1) * jnp.ones((D,), dtype=jnp.float32)
               for i in range(M)]
        return outs, hids, gms, bts

    # 1) Small shapes -> fused single-pass path (one read, one write).
    B = 2
    outs, hids, gms, bts = make_inputs(B, salt=0)
    out, hid = joint_representation_learner(outs, hids, gms, bts)
    out = jax.block_until_ready(out)
    hid = jax.block_until_ready(hid)
    ref_out, ref_hid = _reference(outs, hids, gms, bts)
    assert out.shape == (B, M * S, D) and hid.shape == (B, H)
    assert jnp.allclose(out, ref_out, rtol=1e-4, atol=1e-4)
    assert jnp.allclose(hid, ref_hid, rtol=1e-5, atol=1e-5)

    # 2) Forced two-sweep path with a cdiv tail (B=5, bt=2): exercises the
    #    megacore-split stats grid, tail masking, clamped index_map and the
    #    partially-written last output block.
    B = 5
    outs, hids, gms, bts = make_inputs(B, salt=1)
    out, hid = joint_representation_learner(outs, hids, gms, bts,
                                            force_two_pass=True,
                                            b_tile_override=2)
    out = jax.block_until_ready(out)
    ref_out, ref_hid = _reference(outs, hids, gms, bts)
    assert out.shape == (B, M * S, D)
    assert jnp.allclose(out, ref_out, rtol=1e-4, atol=1e-4)
    assert jnp.allclose(hid, ref_hid, rtol=1e-5, atol=1e-5)

    # 3) Forced two-sweep path, evenly divisible (B=4, bt=2): unmasked fast path.
    B = 4
    outs, hids, gms, bts = make_inputs(B, salt=2)
    out, hid = joint_representation_learner(outs, hids, gms, bts,
                                            force_two_pass=True,
                                            b_tile_override=2)
    out = jax.block_until_ready(out)
    ref_out, ref_hid = _reference(outs, hids, gms, bts)
    assert jnp.allclose(out, ref_out, rtol=1e-4, atol=1e-4)
    assert jnp.allclose(hid, ref_hid, rtol=1e-5, atol=1e-5)

    print("KERNEL_OK")
</pallas_src>

<mosaic_0001>
module attributes {stable_mosaic.version = 11 : i64} {
  func.func @kernel(%arg0: i32, %arg1: memref<2x8x128xf32, #tpu.memory_space<vmem>>, %arg2: memref<2x8x128xf32, #tpu.memory_space<vmem>>, %arg3: memref<2x128xf32, #tpu.memory_space<vmem>>, %arg4: memref<2x128xf32, #tpu.memory_space<vmem>>, %arg5: memref<2x2x8x128xf32, #tpu.memory_space<vmem>>) attributes {dimension_semantics = [#tpu.dimension_semantics<arbitrary>], iteration_bounds = array<i64: 1>, scalar_prefetch = 0 : i64, scratch_operands = 0 : i64, tpu.core_type = #tpu.core_type<tc>, window_params = [{pipeline_mode = #tpu.pipeline_mode<synchronous>, transform_indices = @transform_0, window_bounds = array<i64: 2, 8, 128>}, {pipeline_mode = #tpu.pipeline_mode<synchronous>, transform_indices = @transform_1, window_bounds = array<i64: 2, 8, 128>}, {pipeline_mode = #tpu.pipeline_mode<synchronous>, transform_indices = @transform_2, window_bounds = array<i64: 2, 128>}, {pipeline_mode = #tpu.pipeline_mode<synchronous>, transform_indices = @transform_3, window_bounds = array<i64: 2, 128>}, {pipeline_mode = #tpu.pipeline_mode<synchronous>, transform_indices = @transform_4, window_bounds = array<i64: 2, 2, 8, 128>}]} {
    %c0 = arith.constant 0 : index
    %c0_0 = arith.constant 0 : index
    %c0_1 = arith.constant 0 : index
    %0 = vector.load %arg1[%c0, %c0_0, %c0_1] : memref<2x8x128xf32, #tpu.memory_space<vmem>>, vector<2x8x128xf32>
    %cst = arith.constant dense<0.000000e+00> : vector<8x128xf32>
    %1 = vector.multi_reduction <add>, %0, %cst [0] : vector<2x8x128xf32> to vector<8x128xf32>
    %cst_2 = arith.constant dense<0.000000e+00> : vector<128xf32>
    %2 = vector.multi_reduction <add>, %1, %cst_2 [0] : vector<8x128xf32> to vector<128xf32>
    %3 = vector.shape_cast %2 : vector<128xf32> to vector<1x128xf32>
    %4 = arith.mulf %0, %0 : vector<2x8x128xf32>
    %cst_3 = arith.constant dense<0.000000e+00> : vector<8x128xf32>
    %5 = vector.multi_reduction <add>, %4, %cst_3 [0] : vector<2x8x128xf32> to vector<8x128xf32>
    %cst_4 = arith.constant dense<0.000000e+00> : vector<128xf32>
    %6 = vector.multi_reduction <add>, %5, %cst_4 [0] : vector<8x128xf32> to vector<128xf32>
    %7 = vector.shape_cast %6 : vector<128xf32> to vector<1x128xf32>
    %cst_5 = arith.constant 6.250000e-02 : f32
    %8 = vector.broadcast %cst_5 : f32 to vector<1x128xf32>
    %9 = arith.mulf %3, %8 : vector<1x128xf32>
    %cst_6 = arith.constant 6.250000e-02 : f32
    %10 = vector.broadcast %cst_6 : f32 to vector<1x128xf32>
    %11 = arith.mulf %7, %10 : vector<1x128xf32>
    %12 = arith.mulf %9, %9 : vector<1x128xf32>
    %13 = arith.subf %11, %12 : vector<1x128xf32>
    %cst_7 = arith.constant 0.000000e+00 : f32
    %14 = vector.broadcast %cst_7 : f32 to vector<1x128xf32>
    %15 = arith.maximumf %13, %14 : vector<1x128xf32>
    %c0_8 = arith.constant 0 : index
    %c0_9 = arith.constant 0 : index
    %16 = vector.load %arg3[%c0_8, %c0_9] : memref<2x128xf32, #tpu.memory_space<vmem>>, vector<1x128xf32>
    %cst_10 = arith.constant 9.99999974E-6 : f32
    %17 = vector.broadcast %cst_10 : f32 to vector<1x128xf32>
    %18 = arith.addf %15, %17 : vector<1x128xf32>
    %19 = math.rsqrt %18 : vector<1x128xf32>
    %20 = arith.mulf %16, %19 : vector<1x128xf32>
    %c0_11 = arith.constant 0 : index
    %c0_12 = arith.constant 0 : index
    %21 = vector.load %arg4[%c0_11, %c0_12] : memref<2x128xf32, #tpu.memory_space<vmem>>, vector<1x128xf32>
    %22 = arith.mulf %9, %20 : vector<1x128xf32>
    %23 = arith.subf %21, %22 : vector<1x128xf32>
    %24 = vector.shape_cast %20 : vector<1x128xf32> to vector<1x1x128xf32>
    %25 = vector.broadcast %24 : vector<1x1x128xf32> to vector<2x8x128xf32>
    %26 = arith.mulf %0, %25 : vector<2x8x128xf32>
    %27 = vector.shape_cast %23 : vector<1x128xf32> to vector<1x1x128xf32>
    %28 = vector.broadcast %27 : vector<1x1x128xf32> to vector<2x8x128xf32>
    %29 = arith.addf %26, %28 : vector<2x8x128xf32>
    %30 = vector.shape_cast %29 : vector<2x8x128xf32> to vector<2x1x8x128xf32>
    %c0_13 = arith.constant 0 : index
    %c0_14 = arith.constant 0 : index
    %c0_15 = arith.constant 0 : index
    %c0_16 = arith.constant 0 : index
    %31 = vector.load %arg5[%c0_13, %c0_14, %c0_15, %c0_16] : memref<2x2x8x128xf32, #tpu.memory_space<vmem>>, vector<2x1x8x128xf32>
    tpu.vector_store %arg5[%c0_13, %c0_14, %c0_15, %c0_16], %30 {strides = array<i32>} : memref<2x2x8x128xf32, #tpu.memory_space<vmem>>, vector<2x1x8x128xf32>,
    %c0_17 = arith.constant 0 : index
    %c0_18 = arith.constant 0 : index
    %c0_19 = arith.constant 0 : index
    %32 = vector.load %arg2[%c0_17, %c0_18, %c0_19] : memref<2x8x128xf32, #tpu.memory_space<vmem>>, vector<2x8x128xf32>
    %cst_20 = arith.constant dense<0.000000e+00> : vector<8x128xf32>
    %33 = vector.multi_reduction <add>, %32, %cst_20 [0] : vector<2x8x128xf32> to vector<8x128xf32>
    %cst_21 = arith.constant dense<0.000000e+00> : vector<128xf32>
    %34 = vector.multi_reduction <add>, %33, %cst_21 [0] : vector<8x128xf32> to vector<128xf32>
    %35 = vector.shape_cast %34 : vector<128xf32> to vector<1x128xf32>
    %36 = arith.mulf %32, %32 : vector<2x8x128xf32>
    %cst_22 = arith.constant dense<0.000000e+00> : vector<8x128xf32>
    %37 = vector.multi_reduction <add>, %36, %cst_22 [0] : vector<2x8x128xf32> to vector<8x128xf32>
    %cst_23 = arith.constant dense<0.000000e+00> : vector<128xf32>
    %38 = vector.multi_reduction <add>, %37, %cst_23 [0] : vector<8x128xf32> to vector<128xf32>
    %39 = vector.shape_cast %38 : vector<128xf32> to vector<1x128xf32>
    %cst_24 = arith.constant 6.250000e-02 : f32
    %40 = vector.broadcast %cst_24 : f32 to vector<1x128xf32>
    %41 = arith.mulf %35, %40 : vector<1x128xf32>
    %cst_25 = arith.constant 6.250000e-02 : f32
    %42 = vector.broadcast %cst_25 : f32 to vector<1x128xf32>
    %43 = arith.mulf %39, %42 : vector<1x128xf32>
    %44 = arith.mulf %41, %41 : vector<1x128xf32>
    %45 = arith.subf %43, %44 : vector<1x128xf32>
    %cst_26 = arith.constant 0.000000e+00 : f32
    %46 = vector.broadcast %cst_26 : f32 to vector<1x128xf32>
    %47 = arith.maximumf %45, %46 : vector<1x128xf32>
    %c1 = arith.constant 1 : index
    %c0_27 = arith.constant 0 : index
    %48 = vector.load %arg3[%c1, %c0_27] : memref<2x128xf32, #tpu.memory_space<vmem>>, vector<1x128xf32>
    %cst_28 = arith.constant 9.99999974E-6 : f32
    %49 = vector.broadcast %cst_28 : f32 to vector<1x128xf32>
    %50 = arith.addf %47, %49 : vector<1x128xf32>
    %51 = math.rsqrt %50 : vector<1x128xf32>
    %52 = arith.mulf %48, %51 : vector<1x128xf32>
    %c1_29 = arith.constant 1 : index
    %c0_30 = arith.constant 0 : index
    %53 = vector.load %arg4[%c1_29, %c0_30] : memref<2x128xf32, #tpu.memory_space<vmem>>, vector<1x128xf32>
    %54 = arith.mulf %41, %52 : vector<1x128xf32>
    %55 = arith.subf %53, %54 : vector<1x128xf32>
    %56 = vector.shape_cast %52 : vector<1x128xf32> to vector<1x1x128xf32>
    %57 = vector.broadcast %56 : vector<1x1x128xf32> to vector<2x8x128xf32>
    %58 = arith.mulf %32, %57 : vector<2x8x128xf32>
    %59 = vector.shape_cast %55 : vector<1x128xf32> to vector<1x1x128xf32>
    %60 = vector.broadcast %59 : vector<1x1x128xf32> to vector<2x8x128xf32>
    %61 = arith.addf %58, %60 : vector<2x8x128xf32>
    %62 = vector.shape_cast %61 : vector<2x8x128xf32> to vector<2x1x8x128xf32>
    %c0_31 = arith.constant 0 : index
    %c1_32 = arith.constant 1 : index
    %c0_33 = arith.constant 0 : index
    %c0_34 = arith.constant 0 : index
    %63 = vector.load %arg5[%c0_31, %c1_32, %c0_33, %c0_34] : memref<2x2x8x128xf32, #tpu.memory_space<vmem>>, vector<2x1x8x128xf32>
    tpu.vector_store %arg5[%c0_31, %c1_32, %c0_33, %c0_34], %62 {strides = array<i32>} : memref<2x2x8x128xf32, #tpu.memory_space<vmem>>, vector<2x1x8x128xf32>,
    return
  }
  func.func @transform_0(%arg0: i32) -> (i32, i32, i32) {
    %c0_i32 = arith.constant 0 : i32
    %c0_i32_0 = arith.constant 0 : i32
    %c0_i32_1 = arith.constant 0 : i32
    %c0_i32_2 = arith.constant 0 : i32
    return %c0_i32, %c0_i32_0, %c0_i32_1 : i32, i32, i32
  }
  func.func @transform_1(%arg0: i32) -> (i32, i32, i32) {
    %c0_i32 = arith.constant 0 : i32
    %c0_i32_0 = arith.constant 0 : i32
    %c0_i32_1 = arith.constant 0 : i32
    %c0_i32_2 = arith.constant 0 : i32
    return %c0_i32, %c0_i32_0, %c0_i32_1 : i32, i32, i32
  }
  func.func @transform_2(%arg0: i32) -> (i32, i32) {
    %c0_i32 = arith.constant 0 : i32
    %c0_i32_0 = arith.constant 0 : i32
    %c0_i32_1 = arith.constant 0 : i32
    return %c0_i32, %c0_i32_0 : i32, i32
  }
  func.func @transform_3(%arg0: i32) -> (i32, i32) {
    %c0_i32 = arith.constant 0 : i32
    %c0_i32_0 = arith.constant 0 : i32
    %c0_i32_1 = arith.constant 0 : i32
    return %c0_i32, %c0_i32_0 : i32, i32
  }
  func.func @transform_4(%arg0: i32) -> (i32, i32, i32, i32) {
    %c0_i32 = arith.constant 0 : i32
    %c0_i32_0 = arith.constant 0 : i32
    %c0_i32_1 = arith.constant 0 : i32
    %c0_i32_2 = arith.constant 0 : i32
    %c0_i32_3 = arith.constant 0 : i32
    return %c0_i32, %c0_i32_0, %c0_i32_1, %c0_i32_2 : i32, i32, i32, i32
  }
}

</mosaic_0001>

<llo_original>
// kernel: tpu_custom_call.1
$region0: #{tpu_custom_call.1}
  #allocation0 [shape = 'u32[]', space=smem, size = 0x4, offset = 0x4, fixed_abs, tag = 'smem constant byte address 0x4 - core index']
  #allocation1 [shape = 'u32[144,128]{1,0:T(1,128)}', space=vmem, size = 0x12000, scoped, tag = 'internal scratch']
  %s0 = inlined_call_operand.hbm [shape: f32[2,8,128], index: 0, kind: input, shape index: {}]
  %s1 = inlined_call_operand.hbm [shape: f32[2,8,128], index: 1, kind: input, shape index: {}]
  %s2 = inlined_call_operand.vmem [shape: f32[2,128], index: 2, kind: input, shape index: {}]
  %s3 = inlined_call_operand.vmem [shape: f32[2,128], index: 3, kind: input, shape index: {}]
  %s4 = inlined_call_operand.hbm [shape: f32[2,2,8,128], index: 4, kind: output, shape index: {}]
  %s5 = sld [smem:[#allocation0]]
  $region34: #{tpu_custom_call.1} parent=0
    _
  %s7 = ssub.s32 1, %s5
  %s8 = scalar_select 0, %s7, %s5
  $region1: #{tpu_custom_call.1} parent=0
    #allocation2 [shape = 'u8[8192]{0}', space=vmem, size = 0x2000, scoped, tag = 'input window, operand 0, single buffered']
    #allocation3 [shape = 's32[1]{0}', space=sflag, size = 0x4, scoped, tag = 'scoped memory for tpu_custom_call.1']
    #allocation4 [shape = 's32[1]{0}', space=sflag, size = 0x4, scoped, tag = 'scoped memory for tpu_custom_call.1']
    #allocation5 [shape = 'u8[8192]{0}', space=vmem, size = 0x2000, scoped, tag = 'input window, operand 1, single buffered']
    #allocation6 [shape = 's32[1]{0}', space=sflag, size = 0x4, scoped, tag = 'scoped memory for tpu_custom_call.1']
    #allocation7 [shape = 'u8[16384]{0}', space=vmem, size = 0x4000, scoped, tag = 'output window, operand 0, single buffered']
    %9 = vsyncpa [#allocation3], 0
    %10 = vsyncpa [#allocation6], 0
    %11 = vsyncpa [#allocation4], 0
    // Predicated region
    $region2: #{tpu_custom_call.1} parent=1 // pred_check
      _
    $region3: #{tpu_custom_call.1} parent=1 // pred_check_branch
      %13 = sbr.rel (0) target = $region5
    $region4: #{tpu_custom_call.1} parent=1 // pred_region
      %s15 = ssub.s32 256, 256
      %16 = vsyncadd [#allocation3], %s15
      %s17 = sshll.u32 [#allocation2], 4
      %s18 = int_to_ptr.vmem [resolvable:$true] %s17
      %23 = dma.hbm_to_vmem [thread:$0]  %s0, 256, %s18, [#allocation3], 128, 128, 8
    $region5: #{tpu_custom_call.1} parent=1 // pred_fallthru
      _
    // Predicated region
    $region6: #{tpu_custom_call.1} parent=1 // pred_check
      _
    $region7: #{tpu_custom_call.1} parent=1 // pred_check_branch
      %25 = sbr.rel (0) target = $region9
    $region8: #{tpu_custom_call.1} parent=1 // pred_region
      %s27 = ssub.s32 256, 256
      %28 = vsyncadd [#allocation6], %s27
      %s29 = sshll.u32 [#allocation5], 4
      %s30 = int_to_ptr.vmem [resolvable:$true] %s29
      %35 = dma.hbm_to_vmem [thread:$0]  %s1, 256, %s30, [#allocation6], 128, 128, 8
    $region9: #{tpu_custom_call.1} parent=1 // pred_fallthru
      _
    // Predicated region
    $region10: #{tpu_custom_call.1} parent=1 // pred_check
      _
    $region11: #{tpu_custom_call.1} parent=1 // pred_check_branch
      %37 = sbr.rel (0) target = $region13
    $region12: #{tpu_custom_call.1} parent=1 // pred_region
      _
    $region13: #{tpu_custom_call.1} parent=1 // pred_fallthru
      _
    // Predicated region
    $region14: #{tpu_custom_call.1} parent=1 // pred_check
      _
    $region15: #{tpu_custom_call.1} parent=1 // pred_check_branch
      %39 = sbr.rel (0) target = $region17
    $region16: #{tpu_custom_call.1} parent=1 // pred_region
      _
    $region17: #{tpu_custom_call.1} parent=1 // pred_fallthru
      _
    // Predicated region
    $region18: #{tpu_custom_call.1} parent=1 // pred_check
      _
    $region19: #{tpu_custom_call.1} parent=1 // pred_check_branch
      %41 = sbr.rel (0) target = $region21
    $region20: #{tpu_custom_call.1} parent=1 // pred_region
      %42 = dma.done [#allocation3], 256
    $region21: #{tpu_custom_call.1} parent=1 // pred_fallthru
      _
    // Predicated region
    $region22: #{tpu_custom_call.1} parent=1 // pred_check
      _
    $region23: #{tpu_custom_call.1} parent=1 // pred_check_branch
      %44 = sbr.rel (0) target = $region25
    $region24: #{tpu_custom_call.1} parent=1 // pred_region
      %45 = dma.done [#allocation6], 256
    $region25: #{tpu_custom_call.1} parent=1 // pred_fallthru
      _
    %v46 = vld [vmem:[#allocation2] sm:$0xff]
    %v47 = vld [vmem:[#allocation2 + $0x8] sm:$0xff]
    %v48 = vadd.f32 %v46, %v47
    %v49 = vrot.slane %v48, 4
    %v50 = vadd.f32 %v48, %v49
    %v51 = vrot.slane %v50, 2
    %v52 = vadd.f32 %v50, %v51
    %v53 = vrot.slane %v52, 1
    %v54 = vadd.f32 %v52, %v53
    %v55 = vmul.f32 %v46, %v46
    %v56 = vmul.f32 %v47, %v47
    %v57 = vadd.f32 %v55, %v56
    %v58 = vrot.slane %v57, 4
    %v59 = vadd.f32 %v57, %v58
    %v60 = vrot.slane %v59, 2
    %v61 = vadd.f32 %v59, %v60
    %v62 = vrot.slane %v61, 1
    %v63 = vadd.f32 %v61, %v62
    %v64 = vmul.f32 %v54, 0.0625
    %v65 = vmul.f32 %v63, 0.0625
    %v66 = vmul.f32 %v64, %v64
    %v67 = vsub.f32 %v65, %v66
    %v68 = vmax.f32 %v67, 0.0
    %v69 = vld [vmem:[%s2] sm:$0x1]
    %v70 = vadd.f32 %v68, 1e-05
    %v71 = vrsqrt.pop %v70
    %v72 = vmul.f32 %v69, %v71
    %v73 = vld [vmem:[%s3] sm:$0x1]
    %v74 = vmul.f32 %v64, %v72
    %v75 = vsub.f32 %v73, %v74
    %v76 = vlaneseq
    %v77 = vshrl.u32 %v76, 7
    %v78 = vsub.s32 0, %v77
    %v79 = vrot.slane %v72, %v78
    %v80 = vmul.f32 %v46, %v79
    %v81 = vmul.f32 %v47, %v79
    %v82 = vlaneseq
    %v83 = vshrl.u32 %v82, 7
    %v84 = vsub.s32 0, %v83
    %v85 = vrot.slane %v75, %v84
    %v86 = vadd.f32 %v80, %v85
    %v87 = vadd.f32 %v81, %v85
    %88 = vst [vmem:[#allocation7] sm:$0xff] %v86
    %89 = vst [vmem:[#allocation7 + $0x10] sm:$0xff] %v87
    %v90 = vld [vmem:[#allocation5] sm:$0xff]
    %v91 = vld [vmem:[#allocation5 + $0x8] sm:$0xff]
    %v92 = vadd.f32 %v90, %v91
    %v93 = vrot.slane %v92, 4
    %v94 = vadd.f32 %v92, %v93
    %v95 = vrot.slane %v94, 2
    %v96 = vadd.f32 %v94, %v95
    %v97 = vrot.slane %v96, 1
    %v98 = vadd.f32 %v96, %v97
    %v99 = vmul.f32 %v90, %v90
    %v100 = vmul.f32 %v91, %v91
    %v101 = vadd.f32 %v99, %v100
    %v102 = vrot.slane %v101, 4
    %v103 = vadd.f32 %v101, %v102
    %v104 = vrot.slane %v103, 2
    %v105 = vadd.f32 %v103, %v104
    %v106 = vrot.slane %v105, 1
    %v107 = vadd.f32 %v105, %v106
    %v108 = vmul.f32 %v98, 0.0625
    %v109 = vmul.f32 %v107, 0.0625
    %v110 = vmul.f32 %v108, %v108
    %v111 = vsub.f32 %v109, %v110
    %v112 = vmax.f32 %v111, 0.0
    %v113 = vld [vmem:[%s2 + $0x1] sm:$0x1]
    %v114 = vadd.f32 %v112, 1e-05
    %v115 = vrsqrt.pop %v114
    %v116 = vmul.f32 %v113, %v115
    %v117 = vld [vmem:[%s3 + $0x1] sm:$0x1]
    %v118 = vmul.f32 %v108, %v116
    %v119 = vsub.f32 %v117, %v118
    %v120 = vlaneseq
    %v121 = vshrl.u32 %v120, 7
    %v122 = vsub.s32 0, %v121
    %v123 = vrot.slane %v116, %v122
    %v124 = vmul.f32 %v90, %v123
    %v125 = vmul.f32 %v91, %v123
    %v126 = vlaneseq
    %v127 = vshrl.u32 %v126, 7
    %v128 = vsub.s32 0, %v127
    %v129 = vrot.slane %v119, %v128
    %v130 = vadd.f32 %v124, %v129
    %v131 = vadd.f32 %v125, %v129
    %s132 = scalar_lea.vmem [#allocation7], 8
    %133 = vst [vmem:[%s132] sm:$0xff] %v130
    %134 = vst [vmem:[%s132 + $0x10] sm:$0xff] %v131
    // Predicated region
    $region26: #{tpu_custom_call.1} parent=1 // pred_check
      _
    $region27: #{tpu_custom_call.1} parent=1 // pred_check_branch
      %136 = sbr.rel (0) target = $region29
    $region28: #{tpu_custom_call.1} parent=1 // pred_region
      %s138 = ssub.s32 512, 512
      %139 = vsyncadd [#allocation4], %s138
      %s140 = sshll.u32 [#allocation7], 4
      %s141 = int_to_ptr.vmem [resolvable:$true] %s140
      %146 = dma.vmem_to_hbm [thread:$0]  %s141, 512, %s4, [#allocation4], 128, 128, 8
    $region29: #{tpu_custom_call.1} parent=1 // pred_fallthru
      _
    // Predicated region
    $region30: #{tpu_custom_call.1} parent=1 // pred_check
      _
    $region31: #{tpu_custom_call.1} parent=1 // pred_check_branch
      %148 = sbr.rel (0) target = $region33
    $region32: #{tpu_custom_call.1} parent=1 // pred_region
      %149 = dma.done [#allocation4], 512
    $region33: #{tpu_custom_call.1} parent=1 // pred_fallthru
      _
    %150 = vsyncpa [#allocation3], 1
    %151 = vsyncpa [#allocation6], 1
    %152 = vsyncpa [#allocation4], 1

</llo_original>
